<compile_context>
chip_gen: v7x
topology: tpu7x:2x2x1
jax: 0.10.0
libtpu: 0.0.40
codegen_flags: <defaults>
</compile_context>

<pallas_src>
import functools

import jax
import jax.numpy as jnp
import numpy as np
from jax.experimental import pallas as pl
from jax.experimental.pallas import tpu as pltpu

# Lane-width candidates (largest first) for the flattened 2-D view.
_WIDTH_CANDIDATES = (1024, 512, 256, 128)
# ~2 MiB int32 per input block (2 inputs x 2 buffers + int8 out ~= 9 MiB VMEM).
_TARGET_BLOCK_ELEMS = 512 * 1024


def _round_up(x, m):
    return ((x + m - 1) // m) * m


def _choose_width(n):
    """Largest lane width W (multiple of 128) dividing n; prefer rows >= 8."""
    divisors = [w for w in _WIDTH_CANDIDATES if n % w == 0]
    if not divisors:
        return None
    for w in divisors:                 # largest first
        if n // w >= 8:
            return w
    return divisors[0]                 # tiny tensor: widest anyway


def _requant(x, m0, shift, bias=0):
    """round_half_away_from_zero(x * m0 / 2^(31+shift)) + bias, pure int32.

    `m0`, `shift`, `bias` are static Python ints.  The 16-bit split of m0
    keeps every product within int32 on the VPU (requires |x| < 2^15, which
    the wrapper's headroom assert guarantees)."""
    if shift < 0:
        x = x << (-shift)              # pre-left-shift, then / 2^31
        total = 31
    else:
        total = 31 + shift             # / 2^(31+shift)
    s = total - 16                     # >= 15

    if s >= 31:
        # Multiplier so small that, with |x| < 2^15 and M0 < 2^31,
        # |x*M0| < 2^46 <= 2^(s+15): the rounded quotient is exactly 0.
        return jnp.full(x.shape, bias, dtype=jnp.int32)

    mh = m0 >> 16                      # high 16 bits of M0 (M0 in [2^30, 2^31))
    ml = m0 & 0xFFFF                   # low 16 bits of M0
    hi = x * mh                        # x*M0 = hi*2^16 + lo
    lo = x * ml
    t = hi + (lo >> 16)                # x*M0 = t*2^16 + r, 0 <= r < 2^16
    r = lo & 0xFFFF

    half = 1 << (s - 1)
    # round-half-away-from-zero: for negative exact multiples of 2^16 the
    # int64 reference uses nudge = half-1; reproduce that rare -1 correction.
    adj = jnp.where((t < 0) & (r == 0), jnp.int32(-1), jnp.int32(0))

    # Fold `+bias` into the rounding constant when it cannot overflow int32:
    # ((t + half + adj + bias*2^s) >> s) == ((t + half + adj) >> s) + bias.
    if bias and (abs(bias) << s) < (1 << 28):
        return (t + (half + (bias << s)) + adj) >> s
    res = (t + half + adj) >> s
    return res + bias if bias else res


def _quant_add_math(b, p, *, z_bypass, z_prev, m0_bypass, m0_prev,
                    shift_bypass, shift_prev, z3, a_bit):
    """Shared elementwise math (used inside the kernel and for the tiny tail)."""
    x1 = _requant(b.astype(jnp.int32) - z_bypass, m0_bypass, shift_bypass, bias=z3)
    x2 = _requant(p.astype(jnp.int32) - z_prev, m0_prev, shift_prev)
    qmin = -(2 ** (a_bit - 1))
    qmax = 2 ** (a_bit - 1) - 1
    return jnp.clip(x1 + x2, qmin, qmax)


def _quant_add_kernel(bypass_ref, prev_ref, out_ref, *, params):
    out = _quant_add_math(bypass_ref[...], prev_ref[...], **params)
    out_ref[...] = out.astype(out_ref.dtype)


def _bulk_pallas(bp, pv, qparams, out_dtype):
    rows, W = bp.shape
    target_rows = max(32, _TARGET_BLOCK_ELEMS // W)   # always a multiple of 32
    if rows <= target_rows:
        if rows > 32:
            # Split into >=2 grid steps so v7x's two TensorCores both work;
            # keep block rows a multiple of 32 (int8 sublane packing).
            block_rows = _round_up(-(-rows // 2), 32)
        else:
            block_rows = rows                         # full extent (tiny tensor)
    else:
        block_rows = target_rows
    grid = (pl.cdiv(rows, block_rows),)               # last block masked if partial

    in_bytes = int(bp.dtype.itemsize)
    out_bytes = int(jnp.dtype(out_dtype).itemsize)
    cost = pl.CostEstimate(
        flops=30 * rows * W,
        transcendentals=0,
        bytes_accessed=rows * W * (2 * in_bytes + out_bytes))

    kernel = functools.partial(_quant_add_kernel, params=qparams)
    return pl.pallas_call(
        kernel,
        out_shape=jax.ShapeDtypeStruct((rows, W), out_dtype),
        grid=grid,
        in_specs=[
            pl.BlockSpec((block_rows, W), lambda i: (i, 0)),   # bypass tile
            pl.BlockSpec((block_rows, W), lambda i: (i, 0)),   # prev tile
        ],
        out_specs=pl.BlockSpec((block_rows, W), lambda i: (i, 0)),
        compiler_params=pltpu.CompilerParams(
            dimension_semantics=("parallel",)),
        cost_estimate=cost,
    )(bp, pv)


def quantized_add(bypass, prev, *, z_bypass, z_prev, M0_bypass, M0_prev,
                  shift_bypass, shift_prev, z3, a_bit, out_dtype=None):
    assert bypass.shape == prev.shape
    assert bypass.dtype == prev.dtype
    assert bypass.dtype in (jnp.int8, jnp.int16, jnp.int32), "integer activations"

    a_bit = int(a_bit)
    shift_bypass = int(shift_bypass)
    shift_prev = int(shift_prev)
    # int32 headroom for the 16-bit-split requant: need |(x - z) << (-shift)| < 2^15
    # (the +1 accounts for the zero-point subtraction widening the range).
    assert a_bit + 1 + max(0, -shift_bypass) <= 15, "int32 headroom (bypass)"
    assert a_bit + 1 + max(0, -shift_prev) <= 15, "int32 headroom (prev)"

    if out_dtype is None:
        out_dtype = jnp.int8 if a_bit <= 8 else (jnp.int16 if a_bit <= 16 else jnp.int32)
    out_dtype = jnp.dtype(out_dtype)

    qparams = dict(z_bypass=int(z_bypass), z_prev=int(z_prev),
                   m0_bypass=int(M0_bypass), m0_prev=int(M0_prev),
                   shift_bypass=shift_bypass, shift_prev=shift_prev,
                   z3=int(z3), a_bit=a_bit)

    orig_shape = bypass.shape
    n = int(np.prod(orig_shape))
    flat_b = bypass.reshape(-1)
    flat_p = prev.reshape(-1)

    W = _choose_width(n)
    if W is not None:                    # copy-free fast path
        bulk, rem = n, 0
    else:                                # awkward size: 128-aligned bulk + tiny tail
        bulk = (n // 128) * 128
        rem = n - bulk
        W = _choose_width(bulk) if bulk else None

    parts = []
    if bulk:
        rows = bulk // W
        bb = (flat_b if rem == 0 else flat_b[:bulk]).reshape(rows, W)
        pp = (flat_p if rem == 0 else flat_p[:bulk]).reshape(rows, W)
        bulk_out = _bulk_pallas(bb, pp, qparams, out_dtype)
        if rem == 0:
            return bulk_out.reshape(orig_shape)
        parts.append(bulk_out.reshape(-1))
    if rem:
        # <128 elements: negligible; identical math, no pad/copy of the bulk.
        tail = _quant_add_math(flat_b[bulk:], flat_p[bulk:], **qparams)
        parts.append(tail.astype(out_dtype))

    out_flat = parts[0] if len(parts) == 1 else jnp.concatenate(parts)
    return out_flat.reshape(orig_shape)


def _quantize_M(M):
    """Decompose real multiplier M into (M0 int32 in [2^30, 2^31), shift) with
    M = M0 / 2^(31+shift). Negative shift => M >= 1 (left-shift path)."""
    shift = 0
    while M < 0.5:
        M *= 2.0
        shift += 1
    while M >= 1.0:
        M /= 2.0
        shift -= 1
    M0 = int(round(M * (1 << 31)))
    if M0 == (1 << 31):
        M0 //= 2
        shift -= 1
    return M0, shift


def _reference(bypass, prev, *, z_bypass, z_prev, M0_bypass, M0_prev,
               shift_bypass, shift_prev, z3, a_bit):
    b = np.asarray(bypass, dtype=np.int64) - z_bypass
    p = np.asarray(prev, dtype=np.int64) - z_prev

    def requant(x, m0, shift):
        if shift < 0:
            x = x << (-shift)
            total = 31
        else:
            total = 31 + shift
        prod = x * int(m0)
        half = 1 << (total - 1)
        nudge = np.where(prod >= 0, half, half - 1)
        return (prod + nudge) >> total

    out = requant(b, M0_bypass, shift_bypass) + requant(p, M0_prev, shift_prev) + z3
    qmin = -(2 ** (a_bit - 1))
    qmax = 2 ** (a_bit - 1) - 1
    return np.clip(out, qmin, qmax).astype(np.int32)


if __name__ == "__main__":
    key = jax.random.PRNGKey(0)
    k1, k2, k3, k4, k5, k6 = jax.random.split(key, 6)

    # Deterministic "parameters" (module __init__ stores scalar quant params).
    a_bit = 8
    z_bypass, z_prev, z3 = 3, -2, 5
    s_bypass, s_prev, s3 = 0.117, 0.031, 0.081
    M0_bypass, shift_bypass = _quantize_M(s_bypass / s3)   # M > 1 -> negative shift path
    M0_prev, shift_prev = _quantize_M(s_prev / s3)         # M < 1 -> positive shift path
    qkw = dict(z_bypass=z_bypass, z_prev=z_prev,
               M0_bypass=M0_bypass, M0_prev=M0_prev,
               shift_bypass=shift_bypass, shift_prev=shift_prev,
               z3=z3, a_bit=a_bit)

    # Case 1: small NCHW int32 quantized activations (module's nominal dtype).
    shape1 = (2, 4, 16, 16)
    b1 = jax.random.randint(k1, shape1, -128, 128, dtype=jnp.int32)
    p1 = jax.random.randint(k2, shape1, -128, 128, dtype=jnp.int32)
    out1 = jax.block_until_ready(quantized_add(b1, p1, **qkw))
    np.testing.assert_array_equal(np.asarray(out1, dtype=np.int32),
                                  _reference(b1, p1, **qkw))

    # Case 2: awkward size (exercises the bulk+tail path) with int8 inputs.
    shape2 = (3, 5, 7, 11)
    b2 = jax.random.randint(k3, shape2, -128, 128, dtype=jnp.int32).astype(jnp.int8)
    p2 = jax.random.randint(k4, shape2, -128, 128, dtype=jnp.int32).astype(jnp.int8)
    out2 = jax.block_until_ready(quantized_add(b2, p2, **qkw))
    np.testing.assert_array_equal(np.asarray(out2, dtype=np.int32),
                                  _reference(b2, p2, **qkw))

    # Case 3: enough rows to exercise the >=2-grid-step split and the masked
    # partial last block (36 rows of 1024 -> two 32-row blocks, second partial).
    shape3 = (2, 8, 48, 48)
    b3 = jax.random.randint(k5, shape3, -128, 128, dtype=jnp.int32)
    p3 = jax.random.randint(k6, shape3, -128, 128, dtype=jnp.int32)
    out3 = jax.block_until_ready(quantized_add(b3, p3, **qkw))
    np.testing.assert_array_equal(np.asarray(out3, dtype=np.int32),
                                  _reference(b3, p3, **qkw))

    print("KERNEL_OK")
</pallas_src>

<mosaic_0001>
module attributes {stable_mosaic.version = 11 : i64} {
  func.func @_quant_add_kernel(%arg0: i32, %arg1: memref<8x256xi32, #tpu.memory_space<vmem>>, %arg2: memref<8x256xi32, #tpu.memory_space<vmem>>, %arg3: memref<8x256xi8, #tpu.memory_space<vmem>>) attributes {dimension_semantics = [#tpu.dimension_semantics<parallel>], iteration_bounds = array<i64: 1>, scalar_prefetch = 0 : i64, scratch_operands = 0 : i64, tpu.core_type = #tpu.core_type<tc>, window_params = [{transform_indices = @transform_0, window_bounds = array<i64: 8, 256>}, {transform_indices = @transform_1, window_bounds = array<i64: 8, 256>}, {transform_indices = @transform_2, window_bounds = array<i64: 8, 256>}]} {
    %c0 = arith.constant 0 : index
    %c0_0 = arith.constant 0 : index
    %0 = vector.load %arg1[%c0, %c0_0] : memref<8x256xi32, #tpu.memory_space<vmem>>, vector<8x256xi32>
    %c0_1 = arith.constant 0 : index
    %c0_2 = arith.constant 0 : index
    %1 = vector.load %arg2[%c0_1, %c0_2] : memref<8x256xi32, #tpu.memory_space<vmem>>, vector<8x256xi32>
    %c3_i32 = arith.constant 3 : i32
    %2 = vector.broadcast %c3_i32 : i32 to vector<8x256xi32>
    %3 = arith.subi %0, %2 : vector<8x256xi32>
    %c1_i32 = arith.constant 1 : i32
    %4 = vector.broadcast %c1_i32 : i32 to vector<8x256xi32>
    %5 = arith.shli %3, %4 : vector<8x256xi32>
    %c23665_i32 = arith.constant 23665 : i32
    %6 = vector.broadcast %c23665_i32 : i32 to vector<8x256xi32>
    %7 = arith.muli %5, %6 : vector<8x256xi32>
    %c50972_i32 = arith.constant 50972 : i32
    %8 = vector.broadcast %c50972_i32 : i32 to vector<8x256xi32>
    %9 = arith.muli %5, %8 : vector<8x256xi32>
    %c16_i32 = arith.constant 16 : i32
    %10 = vector.broadcast %c16_i32 : i32 to vector<8x256xi32>
    %11 = arith.shrsi %9, %10 : vector<8x256xi32>
    %12 = arith.addi %7, %11 : vector<8x256xi32>
    %c65535_i32 = arith.constant 65535 : i32
    %13 = vector.broadcast %c65535_i32 : i32 to vector<8x256xi32>
    %14 = arith.andi %9, %13 : vector<8x256xi32>
    %c0_i32 = arith.constant 0 : i32
    %15 = vector.broadcast %c0_i32 : i32 to vector<8x256xi32>
    %16 = arith.cmpi slt, %12, %15 : vector<8x256xi32>
    %c0_i32_3 = arith.constant 0 : i32
    %17 = vector.broadcast %c0_i32_3 : i32 to vector<8x256xi32>
    %18 = arith.cmpi eq, %14, %17 : vector<8x256xi32>
    %19 = arith.andi %16, %18 : vector<8x256xi1>
    %c-1_i32 = arith.constant -1 : i32
    %c0_i32_4 = arith.constant 0 : i32
    %20 = vector.broadcast %c-1_i32 : i32 to vector<8x256xi32>
    %21 = vector.broadcast %c0_i32_4 : i32 to vector<8x256xi32>
    %22 = arith.select %19, %20, %21 : vector<8x256xi1>, vector<8x256xi32>
    %c180224_i32 = arith.constant 180224 : i32
    %23 = vector.broadcast %c180224_i32 : i32 to vector<8x256xi32>
    %24 = arith.addi %12, %23 : vector<8x256xi32>
    %25 = arith.addi %24, %22 : vector<8x256xi32>
    %c15_i32 = arith.constant 15 : i32
    %26 = vector.broadcast %c15_i32 : i32 to vector<8x256xi32>
    %27 = arith.shrsi %25, %26 : vector<8x256xi32>
    %c-2_i32 = arith.constant -2 : i32
    %28 = vector.broadcast %c-2_i32 : i32 to vector<8x256xi32>
    %29 = arith.subi %1, %28 : vector<8x256xi32>
    %c25081_i32 = arith.constant 25081 : i32
    %30 = vector.broadcast %c25081_i32 : i32 to vector<8x256xi32>
    %31 = arith.muli %29, %30 : vector<8x256xi32>
    %c44500_i32 = arith.constant 44500 : i32
    %32 = vector.broadcast %c44500_i32 : i32 to vector<8x256xi32>
    %33 = arith.muli %29, %32 : vector<8x256xi32>
    %c16_i32_5 = arith.constant 16 : i32
    %34 = vector.broadcast %c16_i32_5 : i32 to vector<8x256xi32>
    %35 = arith.shrsi %33, %34 : vector<8x256xi32>
    %36 = arith.addi %31, %35 : vector<8x256xi32>
    %c65535_i32_6 = arith.constant 65535 : i32
    %37 = vector.broadcast %c65535_i32_6 : i32 to vector<8x256xi32>
    %38 = arith.andi %33, %37 : vector<8x256xi32>
    %c0_i32_7 = arith.constant 0 : i32
    %39 = vector.broadcast %c0_i32_7 : i32 to vector<8x256xi32>
    %40 = arith.cmpi slt, %36, %39 : vector<8x256xi32>
    %c0_i32_8 = arith.constant 0 : i32
    %41 = vector.broadcast %c0_i32_8 : i32 to vector<8x256xi32>
    %42 = arith.cmpi eq, %38, %41 : vector<8x256xi32>
    %43 = arith.andi %40, %42 : vector<8x256xi1>
    %c-1_i32_9 = arith.constant -1 : i32
    %c0_i32_10 = arith.constant 0 : i32
    %44 = vector.broadcast %c-1_i32_9 : i32 to vector<8x256xi32>
    %45 = vector.broadcast %c0_i32_10 : i32 to vector<8x256xi32>
    %46 = arith.select %43, %44, %45 : vector<8x256xi1>, vector<8x256xi32>
    %c32768_i32 = arith.constant 32768 : i32
    %47 = vector.broadcast %c32768_i32 : i32 to vector<8x256xi32>
    %48 = arith.addi %36, %47 : vector<8x256xi32>
    %49 = arith.addi %48, %46 : vector<8x256xi32>
    %c16_i32_11 = arith.constant 16 : i32
    %50 = vector.broadcast %c16_i32_11 : i32 to vector<8x256xi32>
    %51 = arith.shrsi %49, %50 : vector<8x256xi32>
    %52 = arith.addi %27, %51 : vector<8x256xi32>
    %c-128_i32 = arith.constant -128 : i32
    %c127_i32 = arith.constant 127 : i32
    %53 = vector.broadcast %c-128_i32 : i32 to vector<8x256xi32>
    %54 = arith.maxsi %53, %52 : vector<8x256xi32>
    %55 = vector.broadcast %c127_i32 : i32 to vector<8x256xi32>
    %56 = arith.minsi %55, %54 : vector<8x256xi32>
    %57 = arith.trunci %56 : vector<8x256xi32> to vector<8x256xi8>
    %c0_12 = arith.constant 0 : index
    %c0_13 = arith.constant 0 : index
    %58 = vector.load %arg3[%c0_12, %c0_13] : memref<8x256xi8, #tpu.memory_space<vmem>>, vector<8x256xi8>
    tpu.vector_store %arg3[%c0_12, %c0_13], %57 {strides = array<i32>} : memref<8x256xi8, #tpu.memory_space<vmem>>, vector<8x256xi8>,
    return
  }
  func.func @transform_0(%arg0: i32) -> (i32, i32) {
    %c0_i32 = arith.constant 0 : i32
    %c0_i32_0 = arith.constant 0 : i32
    return %arg0, %c0_i32 : i32, i32
  }
  func.func @transform_1(%arg0: i32) -> (i32, i32) {
    %c0_i32 = arith.constant 0 : i32
    %c0_i32_0 = arith.constant 0 : i32
    return %arg0, %c0_i32 : i32, i32
  }
  func.func @transform_2(%arg0: i32) -> (i32, i32) {
    %c0_i32 = arith.constant 0 : i32
    %c0_i32_0 = arith.constant 0 : i32
    return %arg0, %c0_i32 : i32, i32
  }
}

</mosaic_0001>

<llo_original>
// kernel: tpu_custom_call.1
$region0: #{tpu_custom_call.1}
  #allocation0 [shape = 'u32[]', space=smem, size = 0x4, offset = 0x4, fixed_abs, tag = 'smem constant byte address 0x4 - core index']
  #allocation1 [shape = 'u32[144,128]{1,0:T(1,128)}', space=vmem, size = 0x12000, scoped, tag = 'internal scratch']
  %s0 = inlined_call_operand.hbm [shape: s32[8,256], index: 0, kind: input, shape index: {}]
  %s1 = inlined_call_operand.hbm [shape: s32[8,256], index: 1, kind: input, shape index: {}]
  %s2 = inlined_call_operand.hbm [shape: s8[8,256], index: 2, kind: output, shape index: {}]
  %s3 = sld [smem:[#allocation0]]
  $region26: #{tpu_custom_call.1} parent=0
    _
  %s5 = ssub.s32 1, %s3
  %s6 = scalar_select 0, %s5, %s3
  $region1: #{tpu_custom_call.1} parent=0
    #allocation2 [shape = 'u8[8192]{0}', space=vmem, size = 0x2000, scoped, tag = 'input window, operand 0, single buffered']
    #allocation3 [shape = 's32[1]{0}', space=sflag, size = 0x4, scoped, tag = 'scoped memory for tpu_custom_call.1']
    #allocation4 [shape = 's32[1]{0}', space=sflag, size = 0x4, scoped, tag = 'scoped memory for tpu_custom_call.1']
    #allocation5 [shape = 'u8[8192]{0}', space=vmem, size = 0x2000, scoped, tag = 'input window, operand 1, single buffered']
    #allocation6 [shape = 's32[1]{0}', space=sflag, size = 0x4, scoped, tag = 'scoped memory for tpu_custom_call.1']
    #allocation7 [shape = 'u8[2048]{0}', space=vmem, size = 0x800, scoped, tag = 'output window, operand 0, single buffered']
    %7 = vsyncpa [#allocation3], 0
    %8 = vsyncpa [#allocation6], 0
    %9 = vsyncpa [#allocation4], 0
    // Predicated region
    $region2: #{tpu_custom_call.1} parent=1 // pred_check
      _
    $region3: #{tpu_custom_call.1} parent=1 // pred_check_branch
      %11 = sbr.rel (0) target = $region5
    $region4: #{tpu_custom_call.1} parent=1 // pred_region
      %s13 = ssub.s32 256, 256
      %14 = vsyncadd [#allocation3], %s13
      %s16 = sshll.u32 [#allocation2], 4
      %s17 = int_to_ptr.vmem [resolvable:$true] %s16
      %19 = dma.hbm_to_vmem [thread:$0]  %s0, 256, %s17, [#allocation3]
    $region5: #{tpu_custom_call.1} parent=1 // pred_fallthru
      _
    // Predicated region
    $region6: #{tpu_custom_call.1} parent=1 // pred_check
      _
    $region7: #{tpu_custom_call.1} parent=1 // pred_check_branch
      %21 = sbr.rel (0) target = $region9
    $region8: #{tpu_custom_call.1} parent=1 // pred_region
      %s23 = ssub.s32 256, 256
      %24 = vsyncadd [#allocation6], %s23
      %s26 = sshll.u32 [#allocation5], 4
      %s27 = int_to_ptr.vmem [resolvable:$true] %s26
      %29 = dma.hbm_to_vmem [thread:$0]  %s1, 256, %s27, [#allocation6]
    $region9: #{tpu_custom_call.1} parent=1 // pred_fallthru
      _
    // Predicated region
    $region10: #{tpu_custom_call.1} parent=1 // pred_check
      _
    $region11: #{tpu_custom_call.1} parent=1 // pred_check_branch
      %31 = sbr.rel (0) target = $region13
    $region12: #{tpu_custom_call.1} parent=1 // pred_region
      %32 = dma.done [#allocation3], 256
    $region13: #{tpu_custom_call.1} parent=1 // pred_fallthru
      _
    // Predicated region
    $region14: #{tpu_custom_call.1} parent=1 // pred_check
      _
    $region15: #{tpu_custom_call.1} parent=1 // pred_check_branch
      %34 = sbr.rel (0) target = $region17
    $region16: #{tpu_custom_call.1} parent=1 // pred_region
      %35 = dma.done [#allocation6], 256
    $region17: #{tpu_custom_call.1} parent=1 // pred_fallthru
      _
    %v36 = vld [vmem:[#allocation2] sm:$0xff]
    %v37 = vld [vmem:[#allocation2 + $0x8] sm:$0xff]
    %v38 = vld [vmem:[#allocation5] sm:$0xff]
    %v39 = vld [vmem:[#allocation5 + $0x8] sm:$0xff]
    %v40 = vsub.s32 %v36, 3
    %v41 = vsub.s32 %v37, 3
    %v42 = vshll.u32 %v40, 1
    %v43 = vshll.u32 %v41, 1
    %v44 = vmul.u32 %v42, 23665
    %v45 = vmul.u32 %v43, 23665
    %v46 = vmul.u32 %v42, 50972
    %v47 = vmul.u32 %v43, 50972
    %v48 = vshra.s32 %v46, 16
    %v49 = vshra.s32 %v47, 16
    %v50 = vadd.s32 %v44, %v48
    %v51 = vadd.s32 %v45, %v49
    %v52 = vand.u32 %v46, 65535
    %v53 = vand.u32 %v47, 65535
    %vm54 = vcmp.lt.s32.totalorder %v50, 0
    %vm55 = vcmp.lt.s32.totalorder %v51, 0
    %vm56 = vcmp.eq.s32.totalorder %v52, 0
    %vm57 = vcmp.eq.s32.totalorder %v53, 0
    %vm58 = vmand %vm54, %vm56
    %vm59 = vmand %vm55, %vm57
    %v60 = vsel %vm58, 4294967295, 0
    %v61 = vsel %vm59, 4294967295, 0
    %v62 = vadd.s32 %v50, 180224
    %v63 = vadd.s32 %v51, 180224
    %v64 = vadd.s32 %v62, %v60
    %v65 = vadd.s32 %v63, %v61
    %v66 = vshra.s32 %v64, 15
    %v67 = vshra.s32 %v65, 15
    %v68 = vsub.s32 %v38, 4294967294
    %v69 = vsub.s32 %v39, 4294967294
    %v70 = vmul.u32 %v68, 25081
    %v71 = vmul.u32 %v69, 25081
    %v72 = vmul.u32 %v68, 44500
    %v73 = vmul.u32 %v69, 44500
    %v74 = vshra.s32 %v72, 16
    %v75 = vshra.s32 %v73, 16
    %v76 = vadd.s32 %v70, %v74
    %v77 = vadd.s32 %v71, %v75
    %v78 = vand.u32 %v72, 65535
    %v79 = vand.u32 %v73, 65535
    %vm80 = vcmp.lt.s32.totalorder %v76, 0
    %vm81 = vcmp.lt.s32.totalorder %v77, 0
    %vm82 = vcmp.eq.s32.totalorder %v78, 0
    %vm83 = vcmp.eq.s32.totalorder %v79, 0
    %vm84 = vmand %vm80, %vm82
    %vm85 = vmand %vm81, %vm83
    %v86 = vsel %vm84, 4294967295, 0
    %v87 = vsel %vm85, 4294967295, 0
    %v88 = vadd.s32 %v76, 32768
    %v89 = vadd.s32 %v77, 32768
    %v90 = vadd.s32 %v88, %v86
    %v91 = vadd.s32 %v89, %v87
    %v92 = vshra.s32 %v90, 16
    %v93 = vshra.s32 %v91, 16
    %v94 = vadd.s32 %v66, %v92
    %v95 = vadd.s32 %v67, %v93
    %vm96 = vcmp.gt.s32.totalorder %v94, 4294967168
    %v97 = vsel %vm96, %v94, 4294967168
    %vm98 = vcmp.gt.s32.totalorder %v95, 4294967168
    %v99 = vsel %vm98, %v95, 4294967168
    %vm100 = vcmp.lt.s32.totalorder %v97, 127
    %v101 = vsel %vm100, %v97, 127
    %vm102 = vcmp.lt.s32.totalorder %v99, 127
    %v103 = vsel %vm102, %v99, 127
    %v104 = vpack.c.b16 %v103, %v101
    %v105 = vpack.c.b8 %v104, %v104
    %106 = vst [vmem:[#allocation7] sm:$0xf] %v105
    // Predicated region
    $region18: #{tpu_custom_call.1} parent=1 // pred_check
      _
    $region19: #{tpu_custom_call.1} parent=1 // pred_check_branch
      %108 = sbr.rel (0) target = $region21
    $region20: #{tpu_custom_call.1} parent=1 // pred_region
      %s110 = ssub.s32 64, 64
      %111 = vsyncadd [#allocation4], %s110
      %s113 = sshll.u32 [#allocation7], 4
      %s114 = int_to_ptr.vmem [resolvable:$true] %s113
      %116 = dma.vmem_to_hbm [thread:$0]  %s114, 64, %s2, [#allocation4]
    $region21: #{tpu_custom_call.1} parent=1 // pred_fallthru
      _
    // Predicated region
    $region22: #{tpu_custom_call.1} parent=1 // pred_check
      _
    $region23: #{tpu_custom_call.1} parent=1 // pred_check_branch
      %118 = sbr.rel (0) target = $region25
    $region24: #{tpu_custom_call.1} parent=1 // pred_region
      %119 = dma.done [#allocation4], 64
    $region25: #{tpu_custom_call.1} parent=1 // pred_fallthru
      _
    %120 = vsyncpa [#allocation3], 1
    %121 = vsyncpa [#allocation6], 1
    %122 = vsyncpa [#allocation4], 1

</llo_original>
